<compile_context>
chip_gen: v7x
topology: tpu7x:2x2x1
jax: 0.10.0
libtpu: 0.0.40
codegen_flags: <defaults>
</compile_context>

<pallas_src>
import jax
import jax.numpy as jnp
from jax.experimental import pallas as pl
from jax.experimental.pallas import tpu as pltpu

# ----------------------------- problem sizes --------------------------------
B = 8              # batch
G = 128            # number of genes / input features
H = 64             # hidden width of encoders / decoder / discriminator
S_DIM = 8          # salient latent dim
Z_DIM = 8          # background latent dim
LAT = Z_DIM + S_DIM            # 16
HEAD_W = 2 * LAT               # 32  -> encoder head cols [mu_z|mu_s|lv_z|lv_s]
LIB_SIZE = 1.0e4

VMEM = pl.BlockSpec(memory_space=pltpu.MemorySpace.VMEM)


# ------------------------------ fused kernel --------------------------------
def _cvae_kernel(x_ref, eps_ref, w1e_ref, whe_ref, dcw1_ref, dwh_ref, aux_ref,
                 lat_ref, dec_ref):
    f32 = jnp.float32
    bf16 = jnp.bfloat16

    # ---- unpack the aux slab (static slices, free) -------------------------
    b1e = aux_ref[0:1, 0:2 * H]          # (1, 128) encoder layer-1 bias [qz|qs]
    bhe = aux_ref[1:2, 0:HEAD_W]         # (1, 32)  encoder head bias
    dcb1 = aux_ref[2:3, 0:2 * H]         # (1, 128) dec|disc layer-1 bias
    dbh = aux_ref[3:4, 0:2 * G]          # (1, 256) decoder out|disp head bias
    cw2 = aux_ref[4:5, 0:H]              # (1, 64)  discriminator head weights
    cb2 = aux_ref[5:6, 0:1]              # (1, 1)   discriminator head bias

    # ---- encoders: tg|bg stacked rows, qz|qs fused along lanes -------------
    x_bf = x_ref[...].astype(bf16)                                # (2B, G)
    eps = eps_ref[...]                                            # (2B, 16)
    h_both = jnp.maximum(
        jnp.dot(x_bf, w1e_ref[...], preferred_element_type=f32) + b1e, 0.0)
    heads = jnp.dot(h_both.astype(bf16), whe_ref[...],
                    preferred_element_type=f32) + bhe             # (2B, 32)
    mu_all = heads[:, :LAT]                                       # [mu_z|mu_s]
    lv_all = heads[:, LAT:]                                       # [lv_z|lv_s]
    samp_all = eps * jnp.exp(0.5 * lv_all) + mu_all               # [z | s]

    tg_z = samp_all[:B, :Z_DIM]
    tg_s = samp_all[:B, Z_DIM:]
    bg_z = samp_all[B:, :Z_DIM]

    # ---- decoder (3 passes) + discriminator (q, q_bar) layer-1, fused ------
    # concat([s, z], 1) @ W == s @ W[:S] + z @ W[S:]   (avoids lane concat)
    zeros8 = jnp.zeros_like(tg_s)
    # TODO(synk): deterministic pltpu.roll stands in for torch's random
    # permutation when building q_bar pairs.
    s_sh = pltpu.roll(tg_s, shift=1, axis=0)
    z_sh = pltpu.roll(tg_z, shift=B - 1, axis=0)
    # rows: [tg dec | bg dec (s=0) | fg dec (z=0) | disc q | disc q_bar]
    s_all = jnp.concatenate([tg_s, zeros8, tg_s, tg_s, s_sh], axis=0)  # (5B, S)
    z_all = jnp.concatenate([tg_z, bg_z, zeros8, tg_z, z_sh], axis=0)  # (5B, Z)

    w1_s = dcw1_ref[0:S_DIM, :].astype(bf16)                      # (S, 2H)
    w1_z = dcw1_ref[S_DIM:, :].astype(bf16)                       # (Z, 2H)
    h_all = jnp.maximum(
        jnp.dot(s_all.astype(bf16), w1_s, preferred_element_type=f32)
        + jnp.dot(z_all.astype(bf16), w1_z, preferred_element_type=f32)
        + dcb1, 0.0)                                              # (5B, 128)
    hd = h_all[:3 * B, :H]                                        # (3B, 64) decoder hidden
    hc = h_all[3 * B:, H:]                                        # (2B, 64) discrim hidden

    # ---- decoder head: fused out|disp, softmax * lib_size ------------------
    heads_d = jnp.dot(hd.astype(bf16), dwh_ref[...],
                      preferred_element_type=f32) + dbh           # (3B, 2G)
    logits = heads_d[:, :G]
    m = jnp.max(logits, axis=-1, keepdims=True)
    e = jnp.exp(logits - m)
    px_scale = e * pl.reciprocal(jnp.sum(e, axis=-1, keepdims=True),
                                 approx=False)
    outs = px_scale * LIB_SIZE                                    # (3B, G)
    disp = jnp.exp(heads_d[:2 * B, G:])                           # only used rows

    # ---- discriminator head: VPU mul + lane reduce (no N=1 MXU pass) -------
    logit = jnp.sum(hc * cw2, axis=-1, keepdims=True) + cb2       # (2B, 1)
    score = pl.reciprocal(1.0 + jnp.exp(-logit), approx=False)    # sigmoid

    # ---- lane-dense packed outputs ------------------------------------------
    lat_ref[...] = jnp.zeros(lat_ref.shape, lat_ref.dtype)
    lat_ref[:, 0:HEAD_W] = heads                                  # mu / log_var
    lat_ref[:, HEAD_W:HEAD_W + LAT] = samp_all                    # z | s samples
    lat_ref[:, HEAD_W + LAT:HEAD_W + LAT + 1] = score             # q / q_bar

    dec_ref[0:3 * B, :] = outs                                    # tg|bg|fg out
    dec_ref[3 * B:, :] = disp                                     # tg|bg disp


# ------------------------------ wrapper --------------------------------------
def cvae_forward(tg_inputs, bg_inputs, params, eps):
    """eps: (2B, Z+S) standard-normal noise; rows [tg|bg], cols [z-eps|s-eps]."""
    x = jnp.concatenate([tg_inputs, bg_inputs], axis=0)           # (2B, G)
    lat, dec = pl.pallas_call(
        _cvae_kernel,
        out_shape=(jax.ShapeDtypeStruct((2 * B, 128), jnp.float32),
                   jax.ShapeDtypeStruct((5 * B, G), jnp.float32)),
        in_specs=[VMEM] * 7,
        out_specs=(VMEM, VMEM),
    )(x, eps, params["w1e"], params["whe"], params["dcw1"],
      params["dwh"], params["aux"])

    mu = lat[:, 0:LAT]                       # [mu_z | mu_s]
    lv = lat[:, LAT:HEAD_W]                  # [lv_z | lv_s]
    samp = lat[:, HEAD_W:HEAD_W + LAT]       # [z | s]
    score = lat[:, HEAD_W + LAT:HEAD_W + LAT + 1]

    return {
        "tg_out": dec[0:B], "bg_out": dec[B:2 * B], "fg_out": dec[2 * B:3 * B],
        "tg_disp": dec[3 * B:4 * B], "bg_disp": dec[4 * B:5 * B],
        "tg_z_mu": mu[:B, :Z_DIM], "tg_s_mu": mu[:B, Z_DIM:],
        "bg_z_mu": mu[B:, :Z_DIM], "bg_s_mu": mu[B:, Z_DIM:],
        "tg_z_log_var": lv[:B, :Z_DIM], "tg_s_log_var": lv[:B, Z_DIM:],
        "bg_z_log_var": lv[B:, :Z_DIM], "bg_s_log_var": lv[B:, Z_DIM:],
        "tg_z": samp[:B, :Z_DIM], "tg_s": samp[:B, Z_DIM:],
        "bg_z": samp[B:, :Z_DIM], "bg_s": samp[B:, Z_DIM:],
        "q_score": score[:B], "q_bar_score": score[B:],
    }


# ----------------------------- parameter setup -------------------------------
def _init_linear(key, fan_in, fan_out, scale=0.05):
    kw, kb = jax.random.split(key)
    w = scale * jax.random.normal(kw, (fan_in, fan_out), jnp.float32)
    b = scale * jax.random.normal(kb, (1, fan_out), jnp.float32)
    return w, b


def init_params(key):
    keys = jax.random.split(key, 11)
    bf16 = jnp.bfloat16

    # raw (unfused) parameters
    w1z, b1z = _init_linear(keys[0], G, H)           # qz encoder
    wmuz, bmuz = _init_linear(keys[1], H, Z_DIM)
    wlvz, blvz = _init_linear(keys[2], H, Z_DIM)
    w1s, b1s = _init_linear(keys[3], G, H)            # qs encoder
    wmus, bmus = _init_linear(keys[4], H, S_DIM)
    wlvs, blvs = _init_linear(keys[5], H, S_DIM)
    dw1, db1 = _init_linear(keys[6], LAT, H)           # decoder ([s|z] -> H)
    dwo, dbo = _init_linear(keys[7], H, G)             # decoder out logits
    dwd, dbd = _init_linear(keys[8], H, G)             # decoder dispersion
    cw1, cb1 = _init_linear(keys[9], LAT, H)           # discriminator ([s|z] -> H)
    cw2, cb2 = _init_linear(keys[10], H, 1)

    # fused encoder layer-1: cols [qz | qs]  -> (G, 2H) = (128, 128)
    w1e = jnp.concatenate([w1z, w1s], axis=1).astype(bf16)
    b1e = jnp.concatenate([b1z, b1s], axis=1)                       # (1, 128)

    # block-diagonal fused encoder heads: cols [mu_z | mu_s | lv_z | lv_s]
    whe = jnp.zeros((2 * H, HEAD_W), jnp.float32)
    whe = whe.at[:H, 0:Z_DIM].set(wmuz)
    whe = whe.at[H:, Z_DIM:LAT].set(wmus)
    whe = whe.at[:H, LAT:LAT + Z_DIM].set(wlvz)
    whe = whe.at[H:, LAT + Z_DIM:HEAD_W].set(wlvs)
    whe = whe.astype(bf16)
    bhe = jnp.concatenate([bmuz, bmus, blvz, blvs], axis=1)         # (1, 32)

    # decoder + discriminator layer-1 fused along lanes: cols [dec | disc]
    dcw1 = jnp.concatenate([dw1, cw1], axis=1)                      # (16, 128) f32
    dcb1 = jnp.concatenate([db1, cb1], axis=1)                      # (1, 128)

    # decoder fused out|disp head: (H, 2G) = (64, 256)
    dwh = jnp.concatenate([dwo, dwd], axis=1).astype(bf16)
    dbh = jnp.concatenate([dbo, dbd], axis=1)                       # (1, 256)

    # aux slab: all small biases + discriminator head, one (6, 2G) f32 array
    aux = jnp.zeros((6, 2 * G), jnp.float32)
    aux = aux.at[0, :2 * H].set(b1e[0])
    aux = aux.at[1, :HEAD_W].set(bhe[0])
    aux = aux.at[2, :2 * H].set(dcb1[0])
    aux = aux.at[3, :].set(dbh[0])
    aux = aux.at[4, :H].set(cw2[:, 0])
    aux = aux.at[5, 0].set(cb2[0, 0])

    return {"w1e": w1e, "whe": whe, "dcw1": dcw1, "dwh": dwh, "aux": aux}


# --------------------------------- main ---------------------------------------
if __name__ == "__main__":
    key = jax.random.PRNGKey(0)
    k_param, k_tg, k_bg, k_eps = jax.random.split(key, 4)

    params = init_params(k_param)
    # synthetic non-negative "count-like" inputs
    tg_inputs = jnp.abs(jax.random.normal(k_tg, (B, G), jnp.float32)) * 5.0
    bg_inputs = jnp.abs(jax.random.normal(k_bg, (B, G), jnp.float32)) * 5.0
    # stacked reparameterization noise: rows [tg | bg], cols [z-eps | s-eps]
    eps = jax.random.normal(k_eps, (2 * B, LAT), jnp.float32)

    fwd = jax.jit(cvae_forward)
    out = fwd(tg_inputs, bg_inputs, params, eps)
    jax.block_until_ready(out)

    # light sanity checks
    assert out["tg_out"].shape == (B, G)
    assert out["bg_out"].shape == (B, G)
    assert out["fg_out"].shape == (B, G)
    assert out["tg_disp"].shape == (B, G)
    assert out["q_score"].shape == (B, 1)
    assert out["q_bar_score"].shape == (B, 1)
    assert out["tg_z"].shape == (B, Z_DIM)
    assert out["bg_s"].shape == (B, S_DIM)
    for v in out.values():
        assert bool(jnp.all(jnp.isfinite(v)))
    # decoder output is softmax * lib_size -> rows sum to ~LIB_SIZE
    for k in ("tg_out", "bg_out", "fg_out"):
        row_sums = jnp.sum(out[k], axis=-1)
        assert bool(jnp.all(jnp.abs(row_sums - LIB_SIZE) < 0.02 * LIB_SIZE))
    # discriminator scores are valid probabilities
    assert bool(jnp.all((out["q_score"] > 0.0) & (out["q_score"] < 1.0)))
    print("KERNEL_OK")
</pallas_src>

<mosaic_0001>
module attributes {stable_mosaic.version = 11 : i64} {
  func.func @_cvae_kernel(%arg0: memref<16x128xf32, #tpu.memory_space<vmem>>, %arg1: memref<16x16xf32, #tpu.memory_space<vmem>>, %arg2: memref<128x128xbf16, #tpu.memory_space<vmem>>, %arg3: memref<128x32xbf16, #tpu.memory_space<vmem>>, %arg4: memref<16x128xf32, #tpu.memory_space<vmem>>, %arg5: memref<64x256xbf16, #tpu.memory_space<vmem>>, %arg6: memref<6x256xf32, #tpu.memory_space<vmem>>, %arg7: memref<16x128xf32, #tpu.memory_space<vmem>>, %arg8: memref<40x128xf32, #tpu.memory_space<vmem>>) attributes {dimension_semantics = [], scalar_prefetch = 0 : i64, scratch_operands = 0 : i64, tpu.core_type = #tpu.core_type<tc>} {
    %c0 = arith.constant 0 : index
    %c0_0 = arith.constant 0 : index
    %0 = vector.load %arg6[%c0, %c0_0] : memref<6x256xf32, #tpu.memory_space<vmem>>, vector<1x128xf32>
    %c1 = arith.constant 1 : index
    %c0_1 = arith.constant 0 : index
    %1 = vector.load %arg6[%c1, %c0_1] : memref<6x256xf32, #tpu.memory_space<vmem>>, vector<1x32xf32>
    %c2 = arith.constant 2 : index
    %c0_2 = arith.constant 0 : index
    %2 = vector.load %arg6[%c2, %c0_2] : memref<6x256xf32, #tpu.memory_space<vmem>>, vector<1x128xf32>
    %c3 = arith.constant 3 : index
    %c0_3 = arith.constant 0 : index
    %3 = vector.load %arg6[%c3, %c0_3] : memref<6x256xf32, #tpu.memory_space<vmem>>, vector<1x256xf32>
    %c4 = arith.constant 4 : index
    %c0_4 = arith.constant 0 : index
    %4 = vector.load %arg6[%c4, %c0_4] : memref<6x256xf32, #tpu.memory_space<vmem>>, vector<1x64xf32>
    %c5 = arith.constant 5 : index
    %c0_5 = arith.constant 0 : index
    %5 = vector.load %arg6[%c5, %c0_5] : memref<6x256xf32, #tpu.memory_space<vmem>>, vector<1x1xf32>
    %c0_6 = arith.constant 0 : index
    %c0_7 = arith.constant 0 : index
    %6 = vector.load %arg0[%c0_6, %c0_7] : memref<16x128xf32, #tpu.memory_space<vmem>>, vector<16x128xf32>
    %7 = arith.truncf %6 : vector<16x128xf32> to vector<16x128xbf16>
    %c0_8 = arith.constant 0 : index
    %c0_9 = arith.constant 0 : index
    %8 = vector.load %arg1[%c0_8, %c0_9] : memref<16x16xf32, #tpu.memory_space<vmem>>, vector<16x16xf32>
    %c0_10 = arith.constant 0 : index
    %c0_11 = arith.constant 0 : index
    %9 = vector.load %arg2[%c0_10, %c0_11] : memref<128x128xbf16, #tpu.memory_space<vmem>>, vector<128x128xbf16>
    %cst = arith.constant dense<0.000000e+00> : vector<16x128xf32>
    %10 = tpu.matmul %7, %9, %cst {dimension_numbers = #tpu.dot_dimension_numbers<[1], [0], [0], [1], [0, 0, 1, 1], [], []>} : vector<16x128xbf16>, vector<128x128xbf16>, vector<16x128xf32> -> vector<16x128xf32>
    %11 = vector.broadcast %0 : vector<1x128xf32> to vector<16x128xf32>
    %12 = arith.addf %10, %11 : vector<16x128xf32>
    %cst_12 = arith.constant 0.000000e+00 : f32
    %13 = vector.broadcast %cst_12 : f32 to vector<16x128xf32>
    %14 = arith.maximumf %12, %13 : vector<16x128xf32>
    %15 = arith.truncf %14 : vector<16x128xf32> to vector<16x128xbf16>
    %c0_13 = arith.constant 0 : index
    %c0_14 = arith.constant 0 : index
    %16 = vector.load %arg3[%c0_13, %c0_14] : memref<128x32xbf16, #tpu.memory_space<vmem>>, vector<128x32xbf16>
    %cst_15 = arith.constant dense<0.000000e+00> : vector<16x32xf32>
    %17 = tpu.matmul %15, %16, %cst_15 {dimension_numbers = #tpu.dot_dimension_numbers<[1], [0], [0], [1], [0, 0, 1, 1], [], []>} : vector<16x128xbf16>, vector<128x32xbf16>, vector<16x32xf32> -> vector<16x32xf32>
    %18 = vector.broadcast %1 : vector<1x32xf32> to vector<16x32xf32>
    %19 = arith.addf %17, %18 : vector<16x32xf32>
    %20 = vector.extract_strided_slice %19 {offsets = [0, 0], sizes = [16, 16], strides = [1, 1]} : vector<16x32xf32> to vector<16x16xf32>
    %21 = vector.extract_strided_slice %19 {offsets = [0, 16], sizes = [16, 16], strides = [1, 1]} : vector<16x32xf32> to vector<16x16xf32>
    %cst_16 = arith.constant 5.000000e-01 : f32
    %22 = vector.broadcast %cst_16 : f32 to vector<16x16xf32>
    %23 = arith.mulf %22, %21 : vector<16x16xf32>
    %24 = math.exp %23 : vector<16x16xf32>
    %25 = arith.mulf %8, %24 : vector<16x16xf32>
    %26 = arith.addf %25, %20 : vector<16x16xf32>
    %27 = vector.extract_strided_slice %26 {offsets = [0, 0], sizes = [8, 8], strides = [1, 1]} : vector<16x16xf32> to vector<8x8xf32>
    %28 = vector.extract_strided_slice %26 {offsets = [0, 8], sizes = [8, 8], strides = [1, 1]} : vector<16x16xf32> to vector<8x8xf32>
    %29 = vector.extract_strided_slice %26 {offsets = [8, 0], sizes = [8, 8], strides = [1, 1]} : vector<16x16xf32> to vector<8x8xf32>
    %cst_17 = arith.constant 0.000000e+00 : f32
    %30 = vector.broadcast %cst_17 : f32 to vector<8x8xf32>
    %c1_i32 = arith.constant 1 : i32
    %31 = tpu.dynamic_rotate %28 by %c1_i32 dim 0 : vector<8x8xf32>, i32 -> vector<8x8xf32>
    %c7_i32 = arith.constant 7 : i32
    %32 = tpu.dynamic_rotate %27 by %c7_i32 dim 0 : vector<8x8xf32>, i32 -> vector<8x8xf32>
    %33 = tpu.concatenate %28, %30, %28, %28, %31 in 0 : vector<8x8xf32>, vector<8x8xf32>, vector<8x8xf32>, vector<8x8xf32>, vector<8x8xf32> -> vector<40x8xf32>
    %34 = tpu.concatenate %27, %29, %30, %27, %32 in 0 : vector<8x8xf32>, vector<8x8xf32>, vector<8x8xf32>, vector<8x8xf32>, vector<8x8xf32> -> vector<40x8xf32>
    %c0_18 = arith.constant 0 : index
    %c0_19 = arith.constant 0 : index
    %35 = vector.load %arg4[%c0_18, %c0_19] : memref<16x128xf32, #tpu.memory_space<vmem>>, vector<8x128xf32>
    %36 = arith.truncf %35 : vector<8x128xf32> to vector<8x128xbf16>
    %c8 = arith.constant 8 : index
    %c0_20 = arith.constant 0 : index
    %37 = vector.load %arg4[%c8, %c0_20] : memref<16x128xf32, #tpu.memory_space<vmem>>, vector<8x128xf32>
    %38 = arith.truncf %37 : vector<8x128xf32> to vector<8x128xbf16>
    %39 = arith.truncf %33 : vector<40x8xf32> to vector<40x8xbf16>
    %cst_21 = arith.constant dense<0.000000e+00> : vector<40x128xf32>
    %40 = tpu.matmul %39, %36, %cst_21 {dimension_numbers = #tpu.dot_dimension_numbers<[1], [0], [0], [1], [0, 0, 1, 1], [], []>} : vector<40x8xbf16>, vector<8x128xbf16>, vector<40x128xf32> -> vector<40x128xf32>
    %41 = arith.truncf %34 : vector<40x8xf32> to vector<40x8xbf16>
    %cst_22 = arith.constant dense<0.000000e+00> : vector<40x128xf32>
    %42 = tpu.matmul %41, %38, %cst_22 {dimension_numbers = #tpu.dot_dimension_numbers<[1], [0], [0], [1], [0, 0, 1, 1], [], []>} : vector<40x8xbf16>, vector<8x128xbf16>, vector<40x128xf32> -> vector<40x128xf32>
    %43 = arith.addf %40, %42 : vector<40x128xf32>
    %44 = vector.broadcast %2 : vector<1x128xf32> to vector<40x128xf32>
    %45 = arith.addf %43, %44 : vector<40x128xf32>
    %cst_23 = arith.constant 0.000000e+00 : f32
    %46 = vector.broadcast %cst_23 : f32 to vector<40x128xf32>
    %47 = arith.maximumf %45, %46 : vector<40x128xf32>
    %48 = vector.extract_strided_slice %47 {offsets = [0, 0], sizes = [24, 64], strides = [1, 1]} : vector<40x128xf32> to vector<24x64xf32>
    %49 = vector.extract_strided_slice %47 {offsets = [24, 64], sizes = [16, 64], strides = [1, 1]} : vector<40x128xf32> to vector<16x64xf32>
    %50 = arith.truncf %48 : vector<24x64xf32> to vector<24x64xbf16>
    %c0_24 = arith.constant 0 : index
    %c0_25 = arith.constant 0 : index
    %51 = vector.load %arg5[%c0_24, %c0_25] : memref<64x256xbf16, #tpu.memory_space<vmem>>, vector<64x256xbf16>
    %cst_26 = arith.constant dense<0.000000e+00> : vector<24x256xf32>
    %52 = tpu.matmul %50, %51, %cst_26 {dimension_numbers = #tpu.dot_dimension_numbers<[1], [0], [0], [1], [0, 0, 1, 1], [], []>} : vector<24x64xbf16>, vector<64x256xbf16>, vector<24x256xf32> -> vector<24x256xf32>
    %53 = vector.broadcast %3 : vector<1x256xf32> to vector<24x256xf32>
    %54 = arith.addf %52, %53 : vector<24x256xf32>
    %55 = vector.extract_strided_slice %54 {offsets = [0, 0], sizes = [24, 128], strides = [1, 1]} : vector<24x256xf32> to vector<24x128xf32>
    %cst_27 = arith.constant dense<0xFF800000> : vector<24xf32>
    %56 = vector.multi_reduction <maximumf>, %55, %cst_27 [1] : vector<24x128xf32> to vector<24xf32>
    %57 = vector.shape_cast %56 : vector<24xf32> to vector<24x1xf32>
    %58 = vector.broadcast %57 : vector<24x1xf32> to vector<24x128xf32>
    %59 = arith.subf %55, %58 : vector<24x128xf32>
    %60 = math.exp %59 : vector<24x128xf32>
    %cst_28 = arith.constant dense<0.000000e+00> : vector<24xf32>
    %61 = vector.multi_reduction <add>, %60, %cst_28 [1] : vector<24x128xf32> to vector<24xf32>
    %62 = vector.shape_cast %61 : vector<24xf32> to vector<24x1xf32>
    %63 = tpu.reciprocal %62 : vector<24x1xf32> -> vector<24x1xf32>
    %64 = vector.broadcast %63 : vector<24x1xf32> to vector<24x128xf32>
    %65 = arith.mulf %60, %64 : vector<24x128xf32>
    %cst_29 = arith.constant 1.000000e+04 : f32
    %66 = vector.broadcast %cst_29 : f32 to vector<24x128xf32>
    %67 = arith.mulf %65, %66 : vector<24x128xf32>
    %68 = vector.extract_strided_slice %54 {offsets = [0, 128], sizes = [16, 128], strides = [1, 1]} : vector<24x256xf32> to vector<16x128xf32>
    %69 = math.exp %68 : vector<16x128xf32>
    %70 = vector.broadcast %4 : vector<1x64xf32> to vector<16x64xf32>
    %71 = arith.mulf %49, %70 : vector<16x64xf32>
    %cst_30 = arith.constant dense<0.000000e+00> : vector<16xf32>
    %72 = vector.multi_reduction <add>, %71, %cst_30 [1] : vector<16x64xf32> to vector<16xf32>
    %73 = vector.shape_cast %72 : vector<16xf32> to vector<16x1xf32>
    %74 = vector.broadcast %5 : vector<1x1xf32> to vector<16x1xf32>
    %75 = arith.addf %73, %74 : vector<16x1xf32>
    %cst_31 = arith.constant 0.000000e+00 : f32
    %76 = vector.broadcast %cst_31 : f32 to vector<16x1xf32>
    %77 = arith.subf %76, %75 : vector<16x1xf32>
    %78 = math.exp %77 : vector<16x1xf32>
    %cst_32 = arith.constant 1.000000e+00 : f32
    %79 = vector.broadcast %cst_32 : f32 to vector<16x1xf32>
    %80 = arith.addf %79, %78 : vector<16x1xf32>
    %81 = tpu.reciprocal %80 : vector<16x1xf32> -> vector<16x1xf32>
    %cst_33 = arith.constant 0.000000e+00 : f32
    %82 = vector.broadcast %cst_33 : f32 to vector<16x128xf32>
    %c0_34 = arith.constant 0 : index
    %c0_35 = arith.constant 0 : index
    %83 = vector.load %arg7[%c0_34, %c0_35] : memref<16x128xf32, #tpu.memory_space<vmem>>, vector<16x128xf32>
    tpu.vector_store %arg7[%c0_34, %c0_35], %82 {strides = array<i32>} : memref<16x128xf32, #tpu.memory_space<vmem>>, vector<16x128xf32>,
    %c0_36 = arith.constant 0 : index
    %c0_37 = arith.constant 0 : index
    %84 = vector.load %arg7[%c0_36, %c0_37] : memref<16x128xf32, #tpu.memory_space<vmem>>, vector<16x32xf32>
    tpu.vector_store %arg7[%c0_36, %c0_37], %19 {strides = array<i32>} : memref<16x128xf32, #tpu.memory_space<vmem>>, vector<16x32xf32>,
    %c0_38 = arith.constant 0 : index
    %c32 = arith.constant 32 : index
    %85 = vector.load %arg7[%c0_38, %c32] : memref<16x128xf32, #tpu.memory_space<vmem>>, vector<16x16xf32>
    tpu.vector_store %arg7[%c0_38, %c32], %26 {strides = array<i32>} : memref<16x128xf32, #tpu.memory_space<vmem>>, vector<16x16xf32>,
    %c0_39 = arith.constant 0 : index
    %c48 = arith.constant 48 : index
    %86 = vector.load %arg7[%c0_39, %c48] : memref<16x128xf32, #tpu.memory_space<vmem>>, vector<16x1xf32>
    tpu.vector_store %arg7[%c0_39, %c48], %81 {strides = array<i32>} : memref<16x128xf32, #tpu.memory_space<vmem>>, vector<16x1xf32>,
    %c0_40 = arith.constant 0 : index
    %c0_41 = arith.constant 0 : index
    %87 = vector.load %arg8[%c0_40, %c0_41] : memref<40x128xf32, #tpu.memory_space<vmem>>, vector<24x128xf32>
    tpu.vector_store %arg8[%c0_40, %c0_41], %67 {strides = array<i32>} : memref<40x128xf32, #tpu.memory_space<vmem>>, vector<24x128xf32>,
    %c24 = arith.constant 24 : index
    %c0_42 = arith.constant 0 : index
    %88 = vector.load %arg8[%c24, %c0_42] : memref<40x128xf32, #tpu.memory_space<vmem>>, vector<16x128xf32>
    tpu.vector_store %arg8[%c24, %c0_42], %69 {strides = array<i32>} : memref<40x128xf32, #tpu.memory_space<vmem>>, vector<16x128xf32>,
    return
  }
}

</mosaic_0001>

<llo_original>
// kernel: cvae_forward.1
$region0: #{cvae_forward.1}
  #allocation0 [shape = 'u32[]', space=smem, size = 0x4, offset = 0x4, fixed_abs, tag = 'smem constant byte address 0x4 - core index']
  #allocation1 [shape = 'u32[144,128]{1,0:T(1,128)}', space=vmem, size = 0x12000, scoped, tag = 'internal scratch']
  %s0 = inlined_call_operand.vmem [shape: f32[16,128], index: 0, kind: input, shape index: {}]
  %s1 = inlined_call_operand.vmem [shape: f32[16,16], index: 1, kind: input, shape index: {}]
  %s2 = inlined_call_operand.vmem [shape: bf16[128,128], index: 2, kind: input, shape index: {}]
  %s3 = inlined_call_operand.vmem [shape: bf16[128,32], index: 3, kind: input, shape index: {}]
  %s4 = inlined_call_operand.vmem [shape: f32[16,128], index: 4, kind: input, shape index: {}]
  %s5 = inlined_call_operand.hbm [shape: bf16[64,256], index: 5, kind: input, shape index: {}]
  %s6 = inlined_call_operand.vmem [shape: f32[6,256], index: 6, kind: input, shape index: {}]
  %s7 = inlined_call_operand.vmem [shape: f32[16,128], index: 7, kind: output, shape index: {0}]
  %s8 = inlined_call_operand.vmem [shape: f32[40,128], index: 8, kind: output, shape index: {1}]
  %9 = xla_tuple %s7, %s8
  %s10 = sld [smem:[#allocation0]]
  $region50: #{cvae_forward.1} parent=0
    _
  %s12 = ssub.s32 1, %s10
  %s13 = scalar_select 0, %s12, %s10
  $region1: #{cvae_forward.1} parent=0
    #allocation2 [shape = 'u8[32768]{0}', space=vmem, size = 0x8000, scoped, tag = 'input window, operand 5, single buffered']
    #allocation3 [shape = 's32[1]{0}', space=sflag, size = 0x4, scoped, tag = 'scoped memory for cvae_forward.1']
    %14 = vsyncpa [#allocation3], 0
    // Predicated region
    $region2: #{cvae_forward.1} parent=1 // pred_check
      _
    $region3: #{cvae_forward.1} parent=1 // pred_check_branch
      %16 = sbr.rel (0) target = $region5
    $region4: #{cvae_forward.1} parent=1 // pred_region
      _
    $region5: #{cvae_forward.1} parent=1 // pred_fallthru
      _
    // Predicated region
    $region6: #{cvae_forward.1} parent=1 // pred_check
      _
    $region7: #{cvae_forward.1} parent=1 // pred_check_branch
      %18 = sbr.rel (0) target = $region9
    $region8: #{cvae_forward.1} parent=1 // pred_region
      _
    $region9: #{cvae_forward.1} parent=1 // pred_fallthru
      _
    // Predicated region
    $region10: #{cvae_forward.1} parent=1 // pred_check
      _
    $region11: #{cvae_forward.1} parent=1 // pred_check_branch
      %20 = sbr.rel (0) target = $region13
    $region12: #{cvae_forward.1} parent=1 // pred_region
      _
    $region13: #{cvae_forward.1} parent=1 // pred_fallthru
      _
    // Predicated region
    $region14: #{cvae_forward.1} parent=1 // pred_check
      _
    $region15: #{cvae_forward.1} parent=1 // pred_check_branch
      %22 = sbr.rel (0) target = $region17
    $region16: #{cvae_forward.1} parent=1 // pred_region
      _
    $region17: #{cvae_forward.1} parent=1 // pred_fallthru
      _
    // Predicated region
    $region18: #{cvae_forward.1} parent=1 // pred_check
      _
    $region19: #{cvae_forward.1} parent=1 // pred_check_branch
      %24 = sbr.rel (0) target = $region21
    $region20: #{cvae_forward.1} parent=1 // pred_region
      _
    $region21: #{cvae_forward.1} parent=1 // pred_fallthru
      _
    // Predicated region
    $region22: #{cvae_forward.1} parent=1 // pred_check
      _
    $region23: #{cvae_forward.1} parent=1 // pred_check_branch
      %26 = sbr.rel (0) target = $region25
    $region24: #{cvae_forward.1} parent=1 // pred_region
      %s28 = ssub.s32 1024, 1024
      %29 = vsyncadd [#allocation3], %s28
      %s30 = sshll.u32 [#allocation2], 4
      %s31 = int_to_ptr.vmem [resolvable:$true] %s30
      %36 = dma.hbm_to_vmem [thread:$0]  %s5, 1024, %s31, [#allocation3], 128, 128, 8
    $region25: #{cvae_forward.1} parent=1 // pred_fallthru
      _
    // Predicated region
    $region26: #{cvae_forward.1} parent=1 // pred_check
      _
    $region27: #{cvae_forward.1} parent=1 // pred_check_branch
      %38 = sbr.rel (0) target = $region29
    $region28: #{cvae_forward.1} parent=1 // pred_region
      _
    $region29: #{cvae_forward.1} parent=1 // pred_fallthru
      _
    // Predicated region
    $region30: #{cvae_forward.1} parent=1 // pred_check
      _
    $region31: #{cvae_forward.1} parent=1 // pred_check_branch
      %40 = sbr.rel (0) target = $region33
    $region32: #{cvae_forward.1} parent=1 // pred_region
      %41 = dma.done [#allocation3], 1024
    $region33: #{cvae_forward.1} parent=1 // pred_fallthru
      _
    %v43 = vld [vmem:[%s6] ss:$0 sm:$0xff]
    %v44 = vld [vmem:[%s6 + $0x1] ss:$0 sm:$0xff]
    %v45 = vld [vmem:[%s6 + $0x2] ss:$0 sm:$0xff]
    %s46 = scalar_lea.vmem %s6, 3
    %v47 = vld [vmem:[%s46] ss:$8 sm:$0x3]
    %v48 = vld [vmem:[%s6 + $0x4] ss:$0 sm:$0xff]
    %v49 = vld [vmem:[%s6 + $0x5] ss:$0 sm:$0xff]
    %v50 = vld [vmem:[%s0] sm:$0xff]
    %v51 = vld [vmem:[%s0 + $0x8] sm:$0xff]
    %v52 = vpack.c.bf16 %v51, %v50
    %v53 = vld [vmem:[%s1] sm:$0xff]
    %v54 = vld [vmem:[%s1 + $0x8] sm:$0xff]
    %v55 = vld [vmem:[%s2] sm:$0xf]
    %v56 = vld [vmem:[%s2 + $0x4] sm:$0xf]
    %v57 = vld [vmem:[%s2 + $0x8] sm:$0xf]
    %v58 = vld [vmem:[%s2 + $0xc] sm:$0xf]
    %v59 = vld [vmem:[%s2 + $0x10] sm:$0xf]
    %v60 = vld [vmem:[%s2 + $0x14] sm:$0xf]
    %v61 = vld [vmem:[%s2 + $0x18] sm:$0xf]
    %v62 = vld [vmem:[%s2 + $0x1c] sm:$0xf]
    %v63 = vld [vmem:[%s2 + $0x20] sm:$0xf]
    %v64 = vld [vmem:[%s2 + $0x24] sm:$0xf]
    %v65 = vld [vmem:[%s2 + $0x28] sm:$0xf]
    %v66 = vld [vmem:[%s2 + $0x2c] sm:$0xf]
    %v67 = vld [vmem:[%s2 + $0x30] sm:$0xf]
    %v68 = vld [vmem:[%s2 + $0x34] sm:$0xf]
    %v69 = vld [vmem:[%s2 + $0x38] sm:$0xf]
    %v70 = vld [vmem:[%s2 + $0x3c] sm:$0xf]
    %v87 = vunpack.c.l.b16 %v55
    %v88 = vunpack.c.l.b16 %v56
    %v89 = vunpack.c.l.b16 %v57
    %v90 = vunpack.c.l.b16 %v58
    %v91 = vunpack.c.l.b16 %v59
    %v92 = vunpack.c.l.b16 %v60
    %v93 = vunpack.c.l.b16 %v61
    %v94 = vunpack.c.l.b16 %v62
    %v95 = vunpack.c.l.b16 %v63
    %v96 = vunpack.c.l.b16 %v64
    %v97 = vunpack.c.l.b16 %v65
    %v98 = vunpack.c.l.b16 %v66
    %v99 = vunpack.c.l.b16 %v67
    %v100 = vunpack.c.l.b16 %v68
    %v101 = vunpack.c.l.b16 %v69
    %v102 = vunpack.c.l.b16 %v70
    %v103 = vpack.c.b16 %v88, %v87
    %v104 = vpack.c.b16 %v90, %v89
    %v105 = vpack.c.b16 %v92, %v91
    %v106 = vpack.c.b16 %v94, %v93
    %v107 = vpack.c.b16 %v96, %v95
    %v108 = vpack.c.b16 %v98, %v97
    %v109 = vpack.c.b16 %v100, %v99
    %v110 = vpack.c.b16 %v102, %v101
    %119 = vmatprep.subr.bf16.mxu0 0
    %120 = vmatpush1.bf16.msra.mxu0 %v103
    %121 = vmatprep.subr.bf16.mxu0 0
    %122 = vmatpush1.bf16.msra.mxu0 %v104
    %123 = vmatprep.subr.bf16.mxu0 0
    %124 = vmatpush1.bf16.msra.mxu0 %v105
    %125 = vmatprep.subr.bf16.mxu0 0
    %126 = vmatpush1.bf16.msra.mxu0 %v106
    %127 = vmatprep.subr.bf16.mxu0 0
    %128 = vmatpush1.bf16.msra.mxu0 %v107
    %129 = vmatprep.subr.bf16.mxu0 0
    %130 = vmatpush1.bf16.msra.mxu0 %v108
    %131 = vmatprep.subr.bf16.mxu0 0
    %132 = vmatpush1.bf16.msra.mxu0 %v109
    %133 = vmatprep.subr.bf16.mxu0 0
    %134 = vmatpush1.bf16.msra.mxu0 %v110
    %135 = vmatprep.subr.bf16.mxu0 0
    %136 = vmatpush1.bf16.msra.mxu0 0
    %137 = vmatprep.subr.bf16.mxu0 0
    %138 = vmatpush1.bf16.msra.mxu0 0
    %139 = vmatprep.subr.bf16.mxu0 0
    %140 = vmatpush1.bf16.msra.mxu0 0
    %141 = vmatprep.subr.bf16.mxu0 0
    %142 = vmatpush1.bf16.msra.mxu0 0
    %143 = vmatprep.subr.bf16.mxu0 0
    %144 = vmatpush1.bf16.msra.mxu0 0
    %145 = vmatprep.subr.bf16.mxu0 0
    %146 = vmatpush1.bf16.msra.mxu0 0
    %147 = vmatprep.subr.bf16.mxu0 0
    %148 = vmatpush1.bf16.msra.mxu0 0
    %149 = vmatprep.subr.bf16.mxu0 0
    %150 = vmatpush1.bf16.msra.mxu0 0
    %151 = vmatprep.mubr.bf16.mxu0 0
    %152 = vmatmul.mubr.bf16.gmra.mrb[0].mxu0 %v52
    %v153 = vpop.f32.mrb[0].mxu0
    %v154 = vadd.f32 %v43, %v153
    %v155 = vpop.f32.mrb[0].mxu0
    %v156 = vpop.f32.mrb[0].mxu0
    %v157 = vadd.f32 %v43, %v156
    %v158 = vpop.f32.mrb[0].mxu0
    %159 = vdwg.mxu0
    %v160 = vmax.f32 %v154, 0.0
    %v161 = vmax.f32 %v157, 0.0
    %v162 = vpack.c.bf16 %v161, %v160
    %v163 = vld [vmem:[%s3] sm:$0xf]
    %v164 = vld [vmem:[%s3 + $0x4] sm:$0xf]
    %v165 = vld [vmem:[%s3 + $0x8] sm:$0xf]
    %v166 = vld [vmem:[%s3 + $0xc] sm:$0xf]
    %v167 = vld [vmem:[%s3 + $0x10] sm:$0xf]
    %v168 = vld [vmem:[%s3 + $0x14] sm:$0xf]
    %v169 = vld [vmem:[%s3 + $0x18] sm:$0xf]
    %v170 = vld [vmem:[%s3 + $0x1c] sm:$0xf]
    %v171 = vld [vmem:[%s3 + $0x20] sm:$0xf]
    %v172 = vld [vmem:[%s3 + $0x24] sm:$0xf]
    %v173 = vld [vmem:[%s3 + $0x28] sm:$0xf]
    %v174 = vld [vmem:[%s3 + $0x2c] sm:$0xf]
    %v175 = vld [vmem:[%s3 + $0x30] sm:$0xf]
    %v176 = vld [vmem:[%s3 + $0x34] sm:$0xf]
    %v177 = vld [vmem:[%s3 + $0x38] sm:$0xf]
    %v178 = vld [vmem:[%s3 + $0x3c] sm:$0xf]
    %v195 = vunpack.c.l.b16 %v163
    %v196 = vunpack.c.l.b16 %v164
    %v197 = vunpack.c.l.b16 %v165
    %v198 = vunpack.c.l.b16 %v166
    %v199 = vunpack.c.l.b16 %v167
    %v200 = vunpack.c.l.b16 %v168
    %v201 = vunpack.c.l.b16 %v169
    %v202 = vunpack.c.l.b16 %v170
    %v203 = vunpack.c.l.b16 %v171
    %v204 = vunpack.c.l.b16 %v172
    %v205 = vunpack.c.l.b16 %v173
    %v206 = vunpack.c.l.b16 %v174
    %v207 = vunpack.c.l.b16 %v175
    %v208 = vunpack.c.l.b16 %v176
    %v209 = vunpack.c.l.b16 %v177
    %v210 = vunpack.c.l.b16 %v178
    %v211 = vpack.c.b16 %v196, %v195
    %v212 = vpack.c.b16 %v198, %v197
    %v213 = vpack.c.b16 %v200, %v199
    %v214 = vpack.c.b16 %v202, %v201
    %v215 = vpack.c.b16 %v204, %v203
    %v216 = vpack.c.b16 %v206, %v205
    %v217 = vpack.c.b16 %v208, %v207
    %v218 = vpack.c.b16 %v210, %v209
    %227 = vmatprep.subr.bf16.mxu0 0
    %228 = vmatpush1.bf16.msra.mxu0 %v211
    %229 = vmatprep.subr.bf16.mxu0 0
    %230 = vmatpush1.bf16.msra.mxu0 %v212
    %231 = vmatprep.subr.bf16.mxu0 0
    %232 = vmatpush1.bf16.msra.mxu0 %v213
    %233 = vmatprep.subr.bf16.mxu0 0
    %234 = vmatpush1.bf16.msra.mxu0 %v214
    %235 = vmatprep.subr.bf16.mxu0 0
    %236 = vmatpush1.bf16.msra.mxu0 %v215
    %237 = vmatprep.subr.bf16.mxu0 0
    %238 = vmatpush1.bf16.msra.mxu0 %v216
    %239 = vmatprep.subr.bf16.mxu0 0
    %240 = vmatpush1.bf16.msra.mxu0 %v217
    %241 = vmatprep.subr.bf16.mxu0 0
    %242 = vmatpush1.bf16.msra.mxu0 %v218
    %243 = vmatprep.subr.bf16.mxu0 0
    %244 = vmatpush1.bf16.msra.mxu0 0
    %245 = vmatprep.subr.bf16.mxu0 0
    %246 = vmatpush1.bf16.msra.mxu0 0
    %247 = vmatprep.subr.bf16.mxu0 0
    %248 = vmatpush1.bf16.msra.mxu0 0
    %249 = vmatprep.subr.bf16.mxu0 0
    %250 = vmatpush1.bf16.msra.mxu0 0
    %251 = vmatprep.subr.bf16.mxu0 0
    %252 = vmatpush1.bf16.msra.mxu0 0
    %253 = vmatprep.subr.bf16.mxu0 0
    %254 = vmatpush1.bf16.msra.mxu0 0
    %255 = vmatprep.subr.bf16.mxu0 0
    %256 = vmatpush1.bf16.msra.mxu0 0
    %257 = vmatprep.subr.bf16.mxu0 0
    %258 = vmatpush1.bf16.msra.mxu0 0
    %259 = vmatprep.mubr.bf16.mxu0 0
    %260 = vmatmul.mubr.bf16.gmra.mrb[0].mxu0 %v162
    %v261 = vpop.f32.mrb[0].mxu0
    %v262 = vadd.f32 %v44, %v261
    %v263 = vpop.f32.mrb[0].mxu0
    %v264 = vpop.f32.mrb[0].mxu0
    %v265 = vadd.f32 %v44, %v264
    %v266 = vpop.f32.mrb[0].mxu0
    %267 = vdwg.mxu0
    %v268 = vmul.f32 %v262, 0.5
    %v269 = vmul.f32 %v265, 0.5
    %v270 = vmul.f32 %v268, 1.442695
    %v271 = vpow.pop %v270
    %v272 = vmul.f32 %v269, 1.442695
    %v273 = vpow.pop %v272
    %276 = vrot.lane.b32.xlu0 %v271, 112
    %v277 = vpop.permute.xlu0 %276
    %278 = vrot.lane.b32.xlu0 %v273, 112
    %v279 = vpop.permute.xlu0 %278
    %v282 = vmul.f32 %v53, %v277
    %v283 = vmul.f32 %v54, %v279
    %v284 = vadd.f32 %v282, %v262
    %v285 = vadd.f32 %v283, %v265
    %287 = vrot.lane.b32.xlu0 %v284, 120
    %v288 = vpop.permute.xlu0 %287
    %v290 = vrot.slane %v288, 7
    %v291 = vrot.slane %v284, 1
    %293 = vrot.lane.b32.xlu0 %v290, 8
    %v294 = vpop.permute.xlu0 %293
    %v296 = vld [vmem:[%s4] sm:$0xff]
    %v297 = vpack.c.bf16 %v296, %v296
    %v298 = vld [vmem:[%s4 + $0x8] sm:$0xff]
    %v299 = vpack.c.bf16 %v298, %v298
    %v300 = vpack.c.bf16 0.0, %v284
    %v301 = vpack.c.bf16 %v284, %v284
    %v302 = vpack.c.bf16 %v294, %v294
    %v303 = vpack.c.bf16 %v285, %v284
    %v304 = vpack.c.bf16 %v284, 0.0
    %v305 = vpack.c.bf16 %v291, %v291
    %vm306 = vcmask 64512
    %v308 = vsel %vm306, %v303, 0
    %v311 = vsel %vm306, %v304, 0
    %v314 = vsel %vm306, %v305, 0
    %vm316 = vcmask 1043456
    %v318 = vsel %vm316, %v299, 0
    %320 = vmatprep.subr.bf16.mxu0 0
    %321 = vmatpush1.bf16.msra.mxu0 %v318
    %322 = vmatprep.subr.bf16.mxu0 0
    %323 = vmatpush1.bf16.msra.mxu0 0
    %324 = vmatprep.subr.bf16.mxu0 0
    %325 = vmatpush1.bf16.msra.mxu0 0
    %326 = vmatprep.subr.bf16.mxu0 0
    %327 = vmatpush1.bf16.msra.mxu0 0
    %328 = vmatprep.subr.bf16.mxu0 0
    %329 = vmatpush1.bf16.msra.mxu0 0
    %330 = vmatprep.subr.bf16.mxu0 0
    %331 = vmatpush1.bf16.msra.mxu0 0
    %332 = vmatprep.subr.bf16.mxu0 0
    %333 = vmatpush1.bf16.msra.mxu0 0
    %334 = vmatprep.subr.bf16.mxu0 0
    %335 = vmatpush1.bf16.msra.mxu0 0
    %336 = vmatprep.subr.bf16.mxu0 0
    %337 = vmatpush1.bf16.msra.mxu0 0
    %338 = vmatprep.subr.bf16.mxu0 0
    %339 = vmatpush1.bf16.msra.mxu0 0
    %340 = vmatprep.subr.bf16.mxu0 0
    %341 = vmatpush1.bf16.msra.mxu0 0
    %342 = vmatprep.subr.bf16.mxu0 0
    %343 = vmatpush1.bf16.msra.mxu0 0
    %344 = vmatprep.subr.bf16.mxu0 0
    %345 = vmatpush1.bf16.msra.mxu0 0
    %346 = vmatprep.subr.bf16.mxu0 0
    %347 = vmatpush1.bf16.msra.mxu0 0
    %348 = vmatprep.subr.bf16.mxu0 0
    %349 = vmatpush1.bf16.msra.mxu0 0
    %350 = vmatprep.subr.bf16.mxu0 0
    %351 = vmatpush1.bf16.msra.mxu0 0
    %352 = vmatprep.mubr.bf16.mxu0 0
    %353 = vmatmul.mubr.bf16.gmra.mrb[0].mxu0 %v308
    %v354 = vpop.f32.mrb[0].mxu0
    %v355 = vadd.f32 0.0, %v354
    %v356 = vpop.f32.mrb[0].mxu0
    %v357 = vpop.f32.mrb[0].mxu0
    %v358 = vadd.f32 0.0, %v357
    %v359 = vpop.f32.mrb[0].mxu0
    %360 = vmatprep.mubr.bf16.mxu0 0
    %361 = vmatmul.mubr.bf16.gmra.mrb[0].mxu0 %v311
    %v362 = vpop.f32.mrb[0].mxu0
    %v363 = vadd.f32 0.0, %v362
    %v364 = vpop.f32.mrb[0].mxu0
    %v365 = vpop.f32.mrb[0].mxu0
    %v366 = vadd.f32 0.0, %v365
    %v367 = vpop.f32.mrb[0].mxu0
    %368 = vmatprep.mubr.bf16.mxu0 0
    %369 = vmatmul.mubr.bf16.gmra.mrb[0].mxu0 %v314
    %v370 = vpop.f32.mrb[0].mxu0
    %v371 = vadd.f32 0.0, %v370
    %v372 = vpop.f32.mrb[0].mxu0
    %v373 = vpop.f32.mrb[0].mxu0
    %v374 = vpop.f32.mrb[0].mxu0
    %375 = vdwg.mxu0
    %379 = vrot.lane.b32.xlu0 %v300, 120
    %v380 = vpop.permute.xlu0 %379
    %381 = vrot.lane.b32.xlu0 %v301, 120
    %v382 = vpop.permute.xlu0 %381
    %383 = vrot.lane.b32.xlu0 %v302, 120
    %v384 = vpop.permute.xlu0 %383
    %v386 = vsel %vm306, %v380, 0
    %v389 = vsel %vm306, %v382, 0
    %v392 = vsel %vm306, %v384, 0
    %v395 = vsel %vm316, %v297, 0
    %397 = vmatprep.subr.bf16.mxu0 0
    %398 = vmatpush1.bf16.msra.mxu0 %v395
    %399 = vmatprep.subr.bf16.mxu0 0
    %400 = vmatpush1.bf16.msra.mxu0 0
    %401 = vmatprep.subr.bf16.mxu0 0
    %402 = vmatpush1.bf16.msra.mxu0 0
    %403 = vmatprep.subr.bf16.mxu0 0
    %404 = vmatpush1.bf16.msra.mxu0 0
    %405 = vmatprep.subr.bf16.mxu0 0
    %406 = vmatpush1.bf16.msra.mxu0 0
    %407 = vmatprep.subr.bf16.mxu0 0
    %408 = vmatpush1.bf16.msra.mxu0 0
    %409 = vmatprep.subr.bf16.mxu0 0
    %410 = vmatpush1.bf16.msra.mxu0 0
    %411 = vmatprep.subr.bf16.mxu0 0
    %412 = vmatpush1.bf16.msra.mxu0 0
    %413 = vmatprep.subr.bf16.mxu0 0
    %414 = vmatpush1.bf16.msra.mxu0 0
    %415 = vmatprep.subr.bf16.mxu0 0
    %416 = vmatpush1.bf16.msra.mxu0 0
    %417 = vmatprep.subr.bf16.mxu0 0
    %418 = vmatpush1.bf16.msra.mxu0 0
    %419 = vmatprep.subr.bf16.mxu0 0
    %420 = vmatpush1.bf16.msra.mxu0 0
    %421 = vmatprep.subr.bf16.mxu0 0
    %422 = vmatpush1.bf16.msra.mxu0 0
    %423 = vmatprep.subr.bf16.mxu0 0
    %424 = vmatpush1.bf16.msra.mxu0 0
    %425 = vmatprep.subr.bf16.mxu0 0
    %426 = vmatpush1.bf16.msra.mxu0 0
    %427 = vmatprep.subr.bf16.mxu0 0
    %428 = vmatpush1.bf16.msra.mxu0 0
    %429 = vmatprep.mubr.bf16.mxu0 0
    %430 = vmatmul.mubr.bf16.gmra.mrb[0].mxu0 %v386
    %v431 = vpop.f32.mrb[0].mxu0
    %v432 = vadd.f32 %v355, %v431
    %v433 = vpop.f32.mrb[0].mxu0
    %v434 = vpop.f32.mrb[0].mxu0
    %v435 = vadd.f32 %v358, %v434
    %v436 = vpop.f32.mrb[0].mxu0
    %437 = vmatprep.mubr.bf16.mxu0 0
    %438 = vmatmul.mubr.bf16.gmra.mrb[0].mxu0 %v389
    %v439 = vpop.f32.mrb[0].mxu0
    %v440 = vadd.f32 %v363, %v439
    %v441 = vpop.f32.mrb[0].mxu0
    %v442 = vpop.f32.mrb[0].mxu0
    %v443 = vadd.f32 %v366, %v442
    %v444 = vpop.f32.mrb[0].mxu0
    %445 = vmatprep.mubr.bf16.mxu0 0
    %446 = vmatmul.mubr.bf16.gmra.mrb[0].mxu0 %v392
    %v447 = vpop.f32.mrb[0].mxu0
    %v448 = vadd.f32 %v371, %v447
    %v449 = vpop.f32.mrb[0].mxu0
    %v450 = vpop.f32.mrb[0].mxu0
    %v451 = vpop.f32.mrb[0].mxu0
    %452 = vdwg.mxu0
    %v453 = vadd.f32 %v432, %v45
    %v454 = vadd.f32 %v435, %v45
    %v455 = vadd.f32 %v440, %v45
    %v456 = vadd.f32 %v443, %v45
    %v457 = vadd.f32 %v448, %v45
    %v458 = vmax.f32 %v453, 0.0
    %v459 = vmax.f32 %v454, 0.0
    %v460 = vmax.f32 %v455, 0.0
    %v461 = vmax.f32 %v456, 0.0
    %v462 = vmax.f32 %v457, 0.0
    %v463 = vpack.c.bf16 %v459, %v458
    %v464 = vpack.c.bf16 %v460, %v460
    %v465 = vld [vmem:[#allocation2] sm:$0xff]
    %v466 = vld [vmem:[#allocation2 + $0x8] sm:$0xff]
    %v467 = vld [vmem:[#allocation2 + $0x10] sm:$0xff]
    %v468 = vld [vmem:[#allocation2 + $0x18] sm:$0xff]
    %v469 = vld [vmem:[#allocation2 + $0x20] sm:$0xff]
    %v470 = vld [vmem:[#allocation2 + $0x28] sm:$0xff]
    %v471 = vld [vmem:[#allocation2 + $0x30] sm:$0xff]
    %v472 = vld [vmem:[#allocation2 + $0x38] sm:$0xff]
    %v474 = vlaneseq
    %v475 = vshrl.u32 %v474, 7
    %v476 = vsub.s32 0, %v475
    %v477 = vrot.slane %v47, %v476
    %v478 = vlaneseq
    %v479 = vshrl.u32 %v478, 7
    %v480 = vsub.s32 1, %v479
    %v481 = vrot.slane %v47, %v480
    %v492 = vunpack.c.l.b16 %v465
    %v493 = vunpack.c.h.b16 %v465
    %v494 = vunpack.c.l.b16 %v466
    %v495 = vunpack.c.h.b16 %v466
    %v496 = vunpack.c.l.b16 %v467
    %v497 = vunpack.c.h.b16 %v467
    %v498 = vunpack.c.l.b16 %v468
    %v499 = vunpack.c.h.b16 %v468
    %v500 = vunpack.c.l.b16 %v469
    %v501 = vunpack.c.h.b16 %v469
    %v502 = vunpack.c.l.b16 %v470
    %v503 = vunpack.c.h.b16 %v470
    %v504 = vunpack.c.l.b16 %v471
    %v505 = vunpack.c.h.b16 %v471
    %v506 = vunpack.c.l.b16 %v472
    %v507 = vunpack.c.h.b16 %v472
    %v508 = vpack.c.b16 %v494, %v492
    %v509 = vpack.c.b16 %v495, %v493
    %v510 = vpack.c.b16 %v498, %v496
    %v511 = vpack.c.b16 %v499, %v497
    %v512 = vpack.c.b16 %v502, %v500
    %v513 = vpack.c.b16 %v503, %v501
    %v514 = vpack.c.b16 %v506, %v504
    %v515 = vpack.c.b16 %v507, %v505
    %vm524 = vcmask 523264
    %v526 = vsel %vm524, %v463, 0
    %v529 = vsel %vm524, %v464, 0
    %531 = vmatprep.subr.bf16.mxu0 %v509
    %532 = vmatpush1.bf16.msra.mxu0 %v508
    %533 = vmatprep.subr.bf16.mxu0 %v511
    %534 = vmatpush1.bf16.msra.mxu0 %v510
    %535 = vmatprep.subr.bf16.mxu0 %v513
    %536 = vmatpush1.bf16.msra.mxu0 %v512
    %537 = vmatprep.subr.bf16.mxu0 %v515
    %538 = vmatpush1.bf16.msra.mxu0 %v514
    %539 = vmatprep.subr.bf16.mxu0 0
    %540 = vmatpush1.bf16.msra.mxu0 0
    %541 = vmatprep.subr.bf16.mxu0 0
    %542 = vmatpush1.bf16.msra.mxu0 0
    %543 = vmatprep.subr.bf16.mxu0 0
    %544 = vmatpush1.bf16.msra.mxu0 0
    %545 = vmatprep.subr.bf16.mxu0 0
    %546 = vmatpush1.bf16.msra.mxu0 0
    %547 = vmatprep.subr.bf16.mxu0 0
    %548 = vmatpush1.bf16.msra.mxu0 0
    %549 = vmatprep.subr.bf16.mxu0 0
    %550 = vmatpush1.bf16.msra.mxu0 0
    %551 = vmatprep.subr.bf16.mxu0 0
    %552 = vmatpush1.bf16.msra.mxu0 0
    %553 = vmatprep.subr.bf16.mxu0 0
    %554 = vmatpush1.bf16.msra.mxu0 0
    %555 = vmatprep.subr.bf16.mxu0 0
    %556 = vmatpush1.bf16.msra.mxu0 0
    %557 = vmatprep.subr.bf16.mxu0 0
    %558 = vmatpush1.bf16.msra.mxu0 0
    %559 = vmatprep.subr.bf16.mxu0 0
    %560 = vmatpush1.bf16.msra.mxu0 0
    %561 = vmatprep.subr.bf16.mxu0 0
    %562 = vmatpush1.bf16.msra.mxu0 0
    %563 = vmatprep.mubr.bf16.mxu0 0
    %564 = vmatmul.mubr.bf16.gmra.mrb[0].mxu0 %v526
    %v565 = vpop.f32.mrb[0].mxu0
    %v566 = vadd.f32 %v477, %v565
    %v567 = vpop.f32.mrb[0].mxu0
    %v568 = vadd.f32 %v481, %v567
    %v569 = vpop.f32.mrb[0].mxu0
    %v570 = vadd.f32 %v477, %v569
    %v571 = vpop.f32.mrb[0].mxu0
    %v572 = vadd.f32 %v481, %v571
    %573 = vmatprep.mubr.bf16.mxu0 0
    %574 = vmatmul.mubr.bf16.gmra.mrb[0].mxu0 %v529
    %v575 = vpop.f32.mrb[0].mxu0
    %v576 = vadd.f32 %v477, %v575
    %v577 = vpop.f32.mrb[0].mxu0
    %v578 = vpop.f32.mrb[0].mxu0
    %v579 = vpop.f32.mrb[0].mxu0
    %580 = vdwg.mxu0
    %581 = vmax.xlane.f32.xlu0 %v566
    %v582 = vpop.xlane.xlu0 %581
    %583 = vmax.xlane.f32.xlu0 %v570
    %v584 = vpop.xlane.xlu0 %583
    %585 = vmax.xlane.f32.xlu0 %v576
    %v586 = vpop.xlane.xlu0 %585
    %v587 = vsub.f32 %v566, %v582
    %v588 = vsub.f32 %v570, %v584
    %v589 = vsub.f32 %v576, %v586
    %v590 = vmul.f32 %v587, 1.442695
    %v591 = vpow.pop %v590
    %v592 = vmul.f32 %v588, 1.442695
    %v593 = vpow.pop %v592
    %v594 = vmul.f32 %v589, 1.442695
    %v595 = vpow.pop %v594
    %596 = vadd.xlane.f32.xlu0 %v591
    %v597 = vpop.xlane.xlu0 %596
    %598 = vadd.xlane.f32.xlu0 %v593
    %v599 = vpop.xlane.xlu0 %598
    %600 = vadd.xlane.f32.xlu0 %v595
    %v601 = vpop.xlane.xlu0 %600
    %v602 = vrcp.pop %v597
    %v603 = vrcp.pop %v599
    %v604 = vrcp.pop %v601
    %v605 = vmul.f32 %v591, %v602
    %v606 = vmul.f32 %v593, %v603
    %v607 = vmul.f32 %v595, %v604
    %v608 = vmul.f32 %v605, 10000.0
    %v609 = vmul.f32 %v606, 10000.0
    %v610 = vmul.f32 %v607, 10000.0
    %v611 = vmul.f32 %v568, 1.442695
    %v612 = vpow.pop %v611
    %v613 = vmul.f32 %v572, 1.442695
    %v614 = vpow.pop %v613
    %616 = vrot.lane.b32.xlu0 %v48, 64
    %v617 = vpop.permute.xlu0 %616
    %v619 = vmul.f32 %v461, %v617
    %v620 = vmul.f32 %v462, %v617
    %623 = vrot.lane.b32.xlu0 %v619, 64
    %v624 = vpop.permute.xlu0 %623
    %625 = vrot.lane.b32.xlu0 %v620, 64
    %v626 = vpop.permute.xlu0 %625
    %v629 = vsel %vm524, %v624, 0.0
    %630 = vadd.xlane.f32.xlu0 %v629
    %v631 = vpop.xlane.xlu0 %630
    %v632 = vsel %vm524, %v626, 0.0
    %633 = vadd.xlane.f32.xlu0 %v632
    %v634 = vpop.xlane.xlu0 %633
    %v635 = vadd.f32 %v631, %v49
    %v636 = vadd.f32 %v634, %v49
    %v637 = vsub.f32 0.0, %v635
    %v638 = vsub.f32 0.0, %v636
    %v639 = vmul.f32 %v637, 1.442695
    %v640 = vpow.pop %v639
    %v641 = vmul.f32 %v638, 1.442695
    %v642 = vpow.pop %v641
    %v643 = vadd.f32 %v640, 1.0
    %v644 = vadd.f32 %v642, 1.0
    %v645 = vrcp.pop %v643
    %v646 = vrcp.pop %v644
    %647 = vst [vmem:[%s7] sm:$0xff] 0.0
    %648 = vst [vmem:[%s7 + $0x8] sm:$0xff] 0.0
    %vm649 = vcmask 261120
    %650 = vst.msk [vmem:[%s7] sm:$0xff] %vm649, %v262
    %651 = vst.msk [vmem:[%s7 + $0x8] sm:$0xff] %vm649, %v265
    %653 = vrot.lane.b32.xlu0 %v284, 32
    %v654 = vpop.permute.xlu0 %653
    %655 = vrot.lane.b32.xlu0 %v285, 32
    %v656 = vpop.permute.xlu0 %655
    %vm659 = vcmask 392448
    %660 = vst.msk [vmem:[%s7] sm:$0xff] %vm659, %v654
    %661 = vst.msk [vmem:[%s7 + $0x8] sm:$0xff] %vm659, %v656
    %664 = vrot.lane.b32.xlu0 %v645, 48
    %v665 = vpop.permute.xlu0 %664
    %666 = vrot.lane.b32.xlu0 %v646, 48
    %v667 = vpop.permute.xlu0 %666
    %vm670 = vcmask 400768
    %671 = vst.msk [vmem:[%s7] sm:$0xff] %vm670, %v665
    %672 = vst.msk [vmem:[%s7 + $0x8] sm:$0xff] %vm670, %v667
    %673 = vst [vmem:[%s8] sm:$0xff] %v608
    %674 = vst [vmem:[%s8 + $0x8] sm:$0xff] %v609
    %675 = vst [vmem:[%s8 + $0x10] sm:$0xff] %v610
    %676 = vst [vmem:[%s8 + $0x18] sm:$0xff] %v612
    %677 = vst [vmem:[%s8 + $0x20] sm:$0xff] %v614
    // Predicated region
    $region34: #{cvae_forward.1} parent=1 // pred_check
      _
    $region35: #{cvae_forward.1} parent=1 // pred_check_branch
      %679 = sbr.rel (0) target = $region37
    $region36: #{cvae_forward.1} parent=1 // pred_region
      _
    $region37: #{cvae_forward.1} parent=1 // pred_fallthru
      _
    // Predicated region
    $region38: #{cvae_forward.1} parent=1 // pred_check
      _
    $region39: #{cvae_forward.1} parent=1 // pred_check_branch
      %681 = sbr.rel (0) target = $region41
    $region40: #{cvae_forward.1} parent=1 // pred_region
      _
    $region41: #{cvae_forward.1} parent=1 // pred_fallthru
      _
    // Predicated region
    $region42: #{cvae_forward.1} parent=1 // pred_check
      _
    $region43: #{cvae_forward.1} parent=1 // pred_check_branch
      %683 = sbr.rel (0) target = $region45
    $region44: #{cvae_forward.1} parent=1 // pred_region
      _
    $region45: #{cvae_forward.1} parent=1 // pred_fallthru
      _
    // Predicated region
    $region46: #{cvae_forward.1} parent=1 // pred_check
      _
    $region47: #{cvae_forward.1} parent=1 // pred_check_branch
      %685 = sbr.rel (0) target = $region49
    $region48: #{cvae_forward.1} parent=1 // pred_region
      _
    $region49: #{cvae_forward.1} parent=1 // pred_fallthru
      _
    %686 = vsyncpa [#allocation3], 1

</llo_original>
